<compile_context>
chip_gen: v5e
topology: v5e:2x2
jax: 0.10.0
libtpu: 0.0.40
codegen_flags: <defaults>
</compile_context>

<pallas_src>
from typing import Dict

import numpy as np
import jax
import jax.numpy as jnp
from jax import lax
from jax.experimental import pallas as pl
from jax.experimental.pallas import tpu as pltpu

UNK = "<UNK>"
PAD = "<PAD>"


def _round_up(x: int, m: int) -> int:
    return ((x + m - 1) // m) * m


# ------------------------ Stage 1: projection kernel -------------------------
def _project_kernel(roots_ref, w1_ref, b1_ref, w2_ref, b2_ref, o_ref):
    """One grid step = one vocab tile of the 2-layer projection.

    hidden is recomputed per vocab tile (microscopic MXU/EUP work); output is a
    lane-dense (B_pad, tn) f32 tile.
    """
    hidden = jnp.tanh(
        jnp.dot(roots_ref[...], w1_ref[...], preferred_element_type=jnp.float32)
        + b1_ref[...]
    )
    o_ref[...] = (
        jnp.dot(hidden, w2_ref[...], preferred_element_type=jnp.float32)
        + b2_ref[...]
    )


# ------------------------ Stage 2: writeback kernel ---------------------------
def _writeback_kernel(logits_ref, o_ref):
    """One grid step = (ts sequence positions) x (one vocab tile).

    o_ref is a flattened 2D block (ts * B_pad, tn).  We store the small
    (B_pad, tn) logits tile ts times at sublane-aligned offsets; no large
    intermediate value is ever materialized.
    """
    b_rows = logits_ref.shape[0]          # B_pad (multiple of 8)
    ts = o_ref.shape[0] // b_rows         # static Python int
    vals = logits_ref[...].astype(o_ref.dtype)

    def body(i, carry):
        off = pl.multiple_of(i * b_rows, 8)
        o_ref[pl.ds(off, b_rows), :] = vals
        return carry

    lax.fori_loop(0, ts, body, 0, unroll=min(8, ts))


# ------------------------------- forward -------------------------------------
def itree_decoder_forward(encoded_data, root_indexes, labels, params, *,
                          out_dtype=jnp.float32,
                          seq_block_bytes: int = 8 << 20):
    """Concrete ITreeDecoder.forward.

    encoded_data : f32[num_nodes, h_enc]
    root_indexes : i32[batch]
    labels       : i32[seq_len, batch]
    returns      : out_dtype[seq_len, batch, out_size]
    """
    w1, b1, w2, b2 = params["w1"], params["b1"], params["w2"], params["b2"]
    seq_len, batch = labels.shape
    h_enc = encoded_data.shape[1]
    h_dec = w1.shape[1]
    out_size = w2.shape[1]
    out_bytes = np.dtype(out_dtype).itemsize

    # Glue: gather the root encodings (indexing, not the hot path).
    roots = jnp.take(encoded_data, root_indexes, axis=0)          # [B, h_enc]

    # Pad to lane/sublane-friendly shapes.
    B_pad = _round_up(batch, 8)
    V_pad = _round_up(out_size, 128)

    # Vocab tile: largest power-of-two multiple of 128 (<= 2048) dividing V_pad
    # whose per-sequence-row footprint stays small.  Bounds VMEM for big vocabs
    # while keeping lane-dense, reasonably contiguous stores.
    tn = 128
    for cand in (2048, 1024, 512, 256):
        if V_pad % cand == 0 and B_pad * cand * max(out_bytes, 4) <= (4 << 20):
            tn = cand
            break
    n_v = V_pad // tn

    roots_p = jnp.zeros((B_pad, h_enc), jnp.float32).at[:batch].set(roots)
    w2_p = jnp.zeros((h_dec, V_pad), jnp.float32).at[:, :out_size].set(w2)
    b2_p = jnp.zeros((1, V_pad), jnp.float32).at[:, :out_size].set(b2)

    # ---------------- Stage 1: logits_p [B_pad, V_pad] ----------------
    proj_vmem = int(max(
        2 * 4 * (B_pad * h_enc + h_enc * h_dec + h_dec
                 + h_dec * tn + tn + B_pad * tn) + (2 << 20),
        16 << 20))
    logits_p = pl.pallas_call(
        _project_kernel,
        out_shape=jax.ShapeDtypeStruct((B_pad, V_pad), jnp.float32),
        grid_spec=pltpu.PrefetchScalarGridSpec(
            num_scalar_prefetch=0,
            grid=(n_v,),
            in_specs=[
                pl.BlockSpec((B_pad, h_enc), lambda v: (0, 0)),
                pl.BlockSpec((h_enc, h_dec), lambda v: (0, 0)),
                pl.BlockSpec((1, h_dec), lambda v: (0, 0)),
                pl.BlockSpec((h_dec, tn), lambda v: (0, v)),
                pl.BlockSpec((1, tn), lambda v: (0, v)),
            ],
            out_specs=pl.BlockSpec((B_pad, tn), lambda v: (0, v)),
        ),
        compiler_params=pltpu.CompilerParams(
            dimension_semantics=("parallel",),
            vmem_limit_bytes=proj_vmem,
        ),
        cost_estimate=pl.CostEstimate(
            flops=int(2 * n_v * B_pad * h_enc * h_dec
                      + 2 * B_pad * h_dec * V_pad),
            transcendentals=int(n_v * B_pad * h_dec),
            bytes_accessed=int(4 * (B_pad * h_enc + h_enc * h_dec + h_dec
                                    + h_dec * V_pad + V_pad + B_pad * V_pad)),
        ),
    )(roots_p, w1, b1, w2_p, b2_p)

    # ---------------- Stage 2: broadcast writeback [S, B, V] ----------------
    # Block multiple sequence positions per grid step.  Target ~seq_block_bytes
    # per output block, ensure >= 2 sequence blocks (v7x megacore), and
    # rebalance so S_pad - seq_len is minimal (avoid wasted HBM writes).
    row_bytes = B_pad * tn * out_bytes
    ts_max = max(1, seq_block_bytes // row_bytes)
    if seq_len >= 2:
        ts_max = min(ts_max, pl.cdiv(seq_len, 2))
    n_seq = pl.cdiv(seq_len, ts_max)
    ts = pl.cdiv(seq_len, n_seq)
    S_pad = n_seq * ts

    out_block_bytes = ts * B_pad * tn * out_bytes
    in_block_bytes = B_pad * tn * 4
    wb_vmem = int(max(2 * (out_block_bytes + in_block_bytes) + (2 << 20),
                      16 << 20))

    cost = pl.CostEstimate(
        flops=0,
        transcendentals=0,
        bytes_accessed=int(n_seq * B_pad * V_pad * 4                 # logits refetch
                           + S_pad * B_pad * V_pad * out_bytes),     # output slab (dominant)
    )

    out2d = pl.pallas_call(
        _writeback_kernel,
        out_shape=jax.ShapeDtypeStruct((S_pad * B_pad, V_pad), out_dtype),
        grid_spec=pltpu.PrefetchScalarGridSpec(
            num_scalar_prefetch=0,
            grid=(n_seq, n_v),
            in_specs=[pl.BlockSpec((B_pad, tn), lambda s, v: (0, v))],
            out_specs=pl.BlockSpec((ts * B_pad, tn), lambda s, v: (s, v)),
        ),
        compiler_params=pltpu.CompilerParams(
            # No cross-step state -> writeback blocks are independent; lets the
            # store-bound loop shard across both TensorCores on v7x.
            dimension_semantics=("parallel", "parallel"),
            vmem_limit_bytes=wb_vmem,
        ),
        cost_estimate=cost,
    )(logits_p)

    # Glue: free row-major reshape + strip padding back to [S, B, V].
    out = out2d.reshape(S_pad, B_pad, V_pad)[:seq_len, :batch, :out_size]
    return out


# --------------------------- module-style wrapper ----------------------------
class ITreeDecoderPallas:
    name = "Interface for decoding tree vectors (Pallas TPU)"

    def __init__(self, h_enc: int, h_dec: int, label_to_id: Dict, key) -> None:
        self.h_enc = h_enc
        self.h_dec = h_dec
        self.label_to_id = dict(label_to_id)
        if UNK not in self.label_to_id:
            self.label_to_id[UNK] = len(self.label_to_id)
        self.out_size = len(self.label_to_id)
        self.pad_index = self.label_to_id[PAD] if PAD in self.label_to_id else -1

        k1, k2 = jax.random.split(key)
        self.params = {
            "w1": (jax.random.normal(k1, (h_enc, h_dec), jnp.float32)
                   * (1.0 / jnp.sqrt(h_enc))),
            "b1": jnp.zeros((1, h_dec), jnp.float32),
            "w2": (jax.random.normal(k2, (h_dec, self.out_size), jnp.float32)
                   * (1.0 / jnp.sqrt(h_dec))),
            "b2": jnp.zeros((1, self.out_size), jnp.float32),
        }

    def __call__(self, encoded_data, root_indexes, labels):
        return itree_decoder_forward(encoded_data, root_indexes, labels, self.params)


# ----------------------------------- main ------------------------------------
if __name__ == "__main__":
    key = jax.random.PRNGKey(0)
    k_enc, k_roots, k_lbl, k_params = jax.random.split(key, 4)

    # Small, interface-consistent shapes.
    num_nodes, h_enc, h_dec = 24, 32, 16
    batch, seq_len = 4, 8

    label_to_id = {f"label_{i}": i for i in range(10)}
    label_to_id[PAD] = len(label_to_id)  # 10

    decoder = ITreeDecoderPallas(h_enc, h_dec, label_to_id, k_params)

    encoded_data = jax.random.normal(k_enc, (num_nodes, h_enc), jnp.float32)
    root_indexes = jax.random.randint(k_roots, (batch,), 0, num_nodes, jnp.int32)
    labels = jax.random.randint(k_lbl, (seq_len, batch), 0, decoder.out_size, jnp.int32)

    logits = decoder(encoded_data, root_indexes, labels)
    logits = jax.block_until_ready(logits)

    # Reference check in plain JAX (same math).
    roots = jnp.take(encoded_data, root_indexes, axis=0)
    hidden = jnp.tanh(roots @ decoder.params["w1"] + decoder.params["b1"])
    ref = hidden @ decoder.params["w2"] + decoder.params["b2"]
    ref = jnp.broadcast_to(ref[None], (seq_len, batch, decoder.out_size))

    assert logits.shape == (seq_len, batch, decoder.out_size)
    assert jnp.allclose(logits, ref, atol=1e-5, rtol=1e-5)

    print("KERNEL_OK")
</pallas_src>

<mosaic_0001>
module attributes {stable_mosaic.version = 11 : i64} {
  func.func @_project_kernel(%arg0: i32, %arg1: memref<8x32xf32, #tpu.memory_space<vmem>>, %arg2: memref<32x16xf32, #tpu.memory_space<vmem>>, %arg3: memref<1x16xf32, #tpu.memory_space<vmem>>, %arg4: memref<16x128xf32, #tpu.memory_space<vmem>>, %arg5: memref<1x128xf32, #tpu.memory_space<vmem>>, %arg6: memref<8x128xf32, #tpu.memory_space<vmem>>) attributes {dimension_semantics = [#tpu.dimension_semantics<parallel>], iteration_bounds = array<i64: 1>, scalar_prefetch = 0 : i64, scratch_operands = 0 : i64, tpu.core_type = #tpu.core_type<tc>, window_params = [{pipeline_mode = #tpu.pipeline_mode<synchronous>, transform_indices = @transform_0, window_bounds = array<i64: 8, 32>}, {pipeline_mode = #tpu.pipeline_mode<synchronous>, transform_indices = @transform_1, window_bounds = array<i64: 32, 16>}, {pipeline_mode = #tpu.pipeline_mode<synchronous>, transform_indices = @transform_2, window_bounds = array<i64: 1, 16>}, {transform_indices = @transform_3, window_bounds = array<i64: 16, 128>}, {transform_indices = @transform_4, window_bounds = array<i64: 1, 128>}, {transform_indices = @transform_5, window_bounds = array<i64: 8, 128>}]} {
    %c0 = arith.constant 0 : index
    %c0_0 = arith.constant 0 : index
    %0 = vector.load %arg1[%c0, %c0_0] : memref<8x32xf32, #tpu.memory_space<vmem>>, vector<8x32xf32>
    %c0_1 = arith.constant 0 : index
    %c0_2 = arith.constant 0 : index
    %1 = vector.load %arg2[%c0_1, %c0_2] : memref<32x16xf32, #tpu.memory_space<vmem>>, vector<32x16xf32>
    %cst = arith.constant dense<0.000000e+00> : vector<8x16xf32>
    %2 = tpu.matmul %0, %1, %cst {dimension_numbers = #tpu.dot_dimension_numbers<[1], [0], [0], [1], [0, 0, 1, 1], [], []>} : vector<8x32xf32>, vector<32x16xf32>, vector<8x16xf32> -> vector<8x16xf32>
    %c0_3 = arith.constant 0 : index
    %c0_4 = arith.constant 0 : index
    %3 = vector.load %arg3[%c0_3, %c0_4] : memref<1x16xf32, #tpu.memory_space<vmem>>, vector<1x16xf32>
    %4 = vector.broadcast %3 : vector<1x16xf32> to vector<8x16xf32>
    %5 = arith.addf %2, %4 : vector<8x16xf32>
    %6 = math.tanh %5 : vector<8x16xf32>
    %c0_5 = arith.constant 0 : index
    %c0_6 = arith.constant 0 : index
    %7 = vector.load %arg4[%c0_5, %c0_6] : memref<16x128xf32, #tpu.memory_space<vmem>>, vector<16x128xf32>
    %cst_7 = arith.constant dense<0.000000e+00> : vector<8x128xf32>
    %8 = tpu.matmul %6, %7, %cst_7 {dimension_numbers = #tpu.dot_dimension_numbers<[1], [0], [0], [1], [0, 0, 1, 1], [], []>} : vector<8x16xf32>, vector<16x128xf32>, vector<8x128xf32> -> vector<8x128xf32>
    %c0_8 = arith.constant 0 : index
    %c0_9 = arith.constant 0 : index
    %9 = vector.load %arg5[%c0_8, %c0_9] : memref<1x128xf32, #tpu.memory_space<vmem>>, vector<1x128xf32>
    %10 = vector.broadcast %9 : vector<1x128xf32> to vector<8x128xf32>
    %11 = arith.addf %8, %10 : vector<8x128xf32>
    %c0_10 = arith.constant 0 : index
    %c0_11 = arith.constant 0 : index
    %12 = vector.load %arg6[%c0_10, %c0_11] : memref<8x128xf32, #tpu.memory_space<vmem>>, vector<8x128xf32>
    tpu.vector_store %arg6[%c0_10, %c0_11], %11 {strides = array<i32>} : memref<8x128xf32, #tpu.memory_space<vmem>>, vector<8x128xf32>,
    return
  }
  func.func @transform_0(%arg0: i32) -> (i32, i32) {
    %c0_i32 = arith.constant 0 : i32
    %c0_i32_0 = arith.constant 0 : i32
    %c0_i32_1 = arith.constant 0 : i32
    return %c0_i32, %c0_i32_0 : i32, i32
  }
  func.func @transform_1(%arg0: i32) -> (i32, i32) {
    %c0_i32 = arith.constant 0 : i32
    %c0_i32_0 = arith.constant 0 : i32
    %c0_i32_1 = arith.constant 0 : i32
    return %c0_i32, %c0_i32_0 : i32, i32
  }
  func.func @transform_2(%arg0: i32) -> (i32, i32) {
    %c0_i32 = arith.constant 0 : i32
    %c0_i32_0 = arith.constant 0 : i32
    %c0_i32_1 = arith.constant 0 : i32
    return %c0_i32, %c0_i32_0 : i32, i32
  }
  func.func @transform_3(%arg0: i32) -> (i32, i32) {
    %c0_i32 = arith.constant 0 : i32
    %c0_i32_0 = arith.constant 0 : i32
    return %c0_i32, %arg0 : i32, i32
  }
  func.func @transform_4(%arg0: i32) -> (i32, i32) {
    %c0_i32 = arith.constant 0 : i32
    %c0_i32_0 = arith.constant 0 : i32
    return %c0_i32, %arg0 : i32, i32
  }
  func.func @transform_5(%arg0: i32) -> (i32, i32) {
    %c0_i32 = arith.constant 0 : i32
    %c0_i32_0 = arith.constant 0 : i32
    return %c0_i32, %arg0 : i32, i32
  }
}

</mosaic_0001>

<llo_original>
// kernel: tpu_custom_call.1
$region0: #{tpu_custom_call.1}
  #allocation0 [shape = 'u32[]', space=smem, size = 0x4, offset = 0x4, fixed_abs, tag = 'smem constant byte address 0x4 - core index']
  #allocation1 [shape = 'u32[72,128]{1,0:T(1,128)}', space=vmem, size = 0x9000, scoped, tag = 'internal scratch']
  %s0 = inlined_call_operand.vmem [shape: f32[8,32], index: 0, kind: input, shape index: {}]
  %s1 = inlined_call_operand.vmem [shape: f32[32,16], index: 1, kind: input, shape index: {}]
  %s2 = inlined_call_operand.vmem [shape: f32[1,16], index: 2, kind: input, shape index: {}]
  %s3 = inlined_call_operand.vmem [shape: f32[16,128], index: 3, kind: input, shape index: {}]
  %s4 = inlined_call_operand.vmem [shape: f32[1,128], index: 4, kind: input, shape index: {}]
  %s5 = inlined_call_operand.hbm [shape: f32[8,128], index: 5, kind: output, shape index: {}]
  %s6 = sld [smem:[#allocation0]]
  $region30: #{tpu_custom_call.1} parent=0
    _
  %s8 = ssub.s32 1, %s6
  %s9 = scalar_select 0, %s8, %s6
  $region1: #{tpu_custom_call.1} parent=0
    #allocation2 [shape = 'u8[4096]{0}', space=vmem, size = 0x1000, scoped, tag = 'output window, operand 0, single buffered']
    #allocation3 [shape = 's32[1]{0}', space=sflag, size = 0x4, scoped, tag = 'scoped memory for tpu_custom_call.1']
    %10 = vsyncpa [#allocation3], 0
    // Predicated region
    $region2: #{tpu_custom_call.1} parent=1 // pred_check
      _
    $region3: #{tpu_custom_call.1} parent=1 // pred_check_branch
      %12 = sbr.rel (0) target = $region5
    $region4: #{tpu_custom_call.1} parent=1 // pred_region
      _
    $region5: #{tpu_custom_call.1} parent=1 // pred_fallthru
      _
    // Predicated region
    $region6: #{tpu_custom_call.1} parent=1 // pred_check
      _
    $region7: #{tpu_custom_call.1} parent=1 // pred_check_branch
      %14 = sbr.rel (0) target = $region9
    $region8: #{tpu_custom_call.1} parent=1 // pred_region
      _
    $region9: #{tpu_custom_call.1} parent=1 // pred_fallthru
      _
    // Predicated region
    $region10: #{tpu_custom_call.1} parent=1 // pred_check
      _
    $region11: #{tpu_custom_call.1} parent=1 // pred_check_branch
      %16 = sbr.rel (0) target = $region13
    $region12: #{tpu_custom_call.1} parent=1 // pred_region
      _
    $region13: #{tpu_custom_call.1} parent=1 // pred_fallthru
      _
    // Predicated region
    $region14: #{tpu_custom_call.1} parent=1 // pred_check
      _
    $region15: #{tpu_custom_call.1} parent=1 // pred_check_branch
      %18 = sbr.rel (0) target = $region17
    $region16: #{tpu_custom_call.1} parent=1 // pred_region
      _
    $region17: #{tpu_custom_call.1} parent=1 // pred_fallthru
      _
    // Predicated region
    $region18: #{tpu_custom_call.1} parent=1 // pred_check
      _
    $region19: #{tpu_custom_call.1} parent=1 // pred_check_branch
      %20 = sbr.rel (0) target = $region21
    $region20: #{tpu_custom_call.1} parent=1 // pred_region
      _
    $region21: #{tpu_custom_call.1} parent=1 // pred_fallthru
      _
    %v21 = vld [vmem:[%s0] sm:$0xff]
    %v22 = vld [vmem:[%s1] sm:$0xff]
    %v23 = vld [vmem:[%s1 + $0x8] sm:$0xff]
    %v24 = vld [vmem:[%s1 + $0x10] sm:$0xff]
    %v25 = vld [vmem:[%s1 + $0x18] sm:$0xff]
    %v26 = vld [vmem:[%s2] sm:$0x1]
    %v28 = vperm.slane %v26, 0
    %vm30 = vcmask 261120
    %v32 = vsel %vm30, %v21, 0
    %34 = vmatpush.msra.mxu0 0.0
    %35 = vmatpush.msra.mxu0 0.0
    %36 = vmatpush.msra.mxu0 0.0
    %37 = vmatpush.msra.mxu0 0.0
    %38 = vmatpush.msra.mxu0 0.0
    %39 = vmatpush.msra.mxu0 0.0
    %40 = vmatpush.msra.mxu0 0.0
    %41 = vmatpush.msra.mxu0 0.0
    %42 = vmatpush.msra.mxu0 0.0
    %43 = vmatpush.msra.mxu0 0.0
    %44 = vmatpush.msra.mxu0 0.0
    %45 = vmatpush.msra.mxu0 0.0
    %46 = vmatpush.msra.mxu0 %v25
    %47 = vmatpush.msra.mxu0 %v24
    %48 = vmatpush.msra.mxu0 %v23
    %49 = vmatpush.msra.mxu0 %v22
    %50 = vmatmul.f32.gmra.mxu0 %v32
    %v51 = vpop.f32.mrf.mxu0
    %v52 = vadd.f32 %v28, %v51
    %53 = vdwg.mxu0
    %v54 = vtanh.pop %v52
    %v55 = vld [vmem:[%s3] sm:$0xff]
    %v56 = vld [vmem:[%s3 + $0x8] sm:$0xff]
    %v57 = vld [vmem:[%s4] sm:$0x1]
    %v59 = vperm.slane %v57, 0
    %vm61 = vcmask 130048
    %v63 = vsel %vm61, %v54, 0
    %65 = vmatpush.msra.mxu0 0.0
    %66 = vmatpush.msra.mxu0 0.0
    %67 = vmatpush.msra.mxu0 0.0
    %68 = vmatpush.msra.mxu0 0.0
    %69 = vmatpush.msra.mxu0 0.0
    %70 = vmatpush.msra.mxu0 0.0
    %71 = vmatpush.msra.mxu0 0.0
    %72 = vmatpush.msra.mxu0 0.0
    %73 = vmatpush.msra.mxu0 0.0
    %74 = vmatpush.msra.mxu0 0.0
    %75 = vmatpush.msra.mxu0 0.0
    %76 = vmatpush.msra.mxu0 0.0
    %77 = vmatpush.msra.mxu0 0.0
    %78 = vmatpush.msra.mxu0 0.0
    %79 = vmatpush.msra.mxu0 %v56
    %80 = vmatpush.msra.mxu0 %v55
    %81 = vmatmul.f32.gmra.mxu0 %v63
    %v82 = vpop.f32.mrf.mxu0
    %v83 = vadd.f32 %v59, %v82
    %84 = vdwg.mxu0
    %85 = vst [vmem:[#allocation2] sm:$0xff] %v83
    // Predicated region
    $region22: #{tpu_custom_call.1} parent=1 // pred_check
      _
    $region23: #{tpu_custom_call.1} parent=1 // pred_check_branch
      %87 = sbr.rel (0) target = $region25
    $region24: #{tpu_custom_call.1} parent=1 // pred_region
      %89 = vsyncadd [#allocation3], 0
      %s91 = sshll.u32 [#allocation2], 4
      %s92 = int_to_ptr.vmem [resolvable:$true] %s91
      %s93 = sshll.u32 %s5, 4
      %s94 = int_to_ptr.hbm [resolvable:$true] %s93
      %96 = dma.vmem_to_hbm [thread:$0]  %s92, 128, %s94, [#allocation3]
    $region25: #{tpu_custom_call.1} parent=1 // pred_fallthru
      _
    // Predicated region
    $region26: #{tpu_custom_call.1} parent=1 // pred_check
      _
    $region27: #{tpu_custom_call.1} parent=1 // pred_check_branch
      %98 = sbr.rel (0) target = $region29
    $region28: #{tpu_custom_call.1} parent=1 // pred_region
      %100 = dma.done [#allocation3], 128
    $region29: #{tpu_custom_call.1} parent=1 // pred_fallthru
      _
    %101 = vsyncpa [#allocation3], 1

</llo_original>
